<compile_context>
chip_gen: v5e
topology: v5e:2x2
jax: 0.10.0
libtpu: 0.0.40
codegen_flags: <defaults>
</compile_context>

<pallas_src>
import functools

import jax
import jax.numpy as jnp
from jax.experimental import pallas as pl
from jax.experimental.pallas import tpu as pltpu

# Working-set budget for block I/O buffers + in-kernel f32 temporaries.
# 32 MiB (plus headroom below) fits every generation: v5e/v6e 128 MiB physical,
# v7x 64 MiB physical VMEM.
_VMEM_WORKING_BUDGET = 32 * 1024 * 1024
# Scoped-VMEM limit handed to Mosaic (defaults are only 16/32 MiB).
_VMEM_LIMIT_BYTES = 48 * 1024 * 1024
_MAX_BLOCK_ROWS = 1024


def _round_up(n: int, m: int) -> int:
    return ((n + m - 1) // m) * m


def _choose_block_rows(rows: int, hidden: int, dtype) -> int:
    itemsize = jnp.dtype(dtype).itemsize
    # Sublane alignment: 8 rows for 4-byte dtypes, 16 for bf16, 32 for 1-byte.
    align = max(8, 32 // max(1, itemsize))
    # Per block-row VMEM: double-buffered input + double-buffered output
    # (Pallas pipelining) plus ~2 f32 temporaries inside the kernel body.
    per_row = 2 * hidden * itemsize + 2 * hidden * itemsize + 2 * hidden * 4
    br = _VMEM_WORKING_BUDGET // max(per_row, 1)
    br = min(br, _MAX_BLOCK_ROWS, _round_up(rows, align))
    br = max(align, (br // align) * align)
    return int(br)


def _layernorm_kernel(x_ref, gamma_ref, beta_ref, o_ref, *, eps: float):
    # x_ref: (block_rows, hidden); gamma/beta: (1, hidden).
    # Cast params once per grid step (named values, outside any hot expression).
    gamma = gamma_ref[...].astype(jnp.float32)
    beta = beta_ref[...].astype(jnp.float32)

    x = x_ref[...].astype(jnp.float32)
    inv_n = 1.0 / x.shape[-1]
    mean = jnp.sum(x, axis=-1, keepdims=True) * inv_n
    mean_sq = jnp.sum(x * x, axis=-1, keepdims=True) * inv_n
    # One-pass biased variance (matches nn.LayerNorm); clamp guards against
    # tiny negatives from cancellation and against garbage in the masked
    # ragged tail block.
    var = jnp.maximum(mean_sq - mean * mean, 0.0)
    inv = jax.lax.rsqrt(var + eps)  # EUP slot -> effectively free vs the VPU
    o_ref[...] = ((x - mean) * inv * gamma + beta).astype(o_ref.dtype)


def layer_norm_pallas(x, gamma, beta, *, eps: float = 1e-5, block_rows: int | None = None):
    """LayerNorm over the last dim of x (any leading dims), elementwise affine.

    For best throughput `hidden` should be a multiple of 128 (lane-dense
    stores); other sizes are still correct (block dim == full array dim).
    """
    orig_shape = x.shape
    hidden = orig_shape[-1]
    rows = 1
    for d in orig_shape[:-1]:
        rows *= d

    x2 = x.reshape(rows, hidden)
    gamma2 = gamma.reshape(1, hidden)
    beta2 = beta.reshape(1, hidden)

    if block_rows is None:
        block_rows = _choose_block_rows(rows, hidden, x.dtype)

    grid = (pl.cdiv(rows, block_rows),)  # ragged last block masked by Pallas

    out = pl.pallas_call(
        functools.partial(_layernorm_kernel, eps=eps),
        out_shape=jax.ShapeDtypeStruct((rows, hidden), x.dtype),
        grid_spec=pltpu.PrefetchScalarGridSpec(
            num_scalar_prefetch=0,
            grid=grid,
            in_specs=[
                pl.BlockSpec((block_rows, hidden), lambda i: (i, 0)),
                pl.BlockSpec((1, hidden), lambda i: (0, 0)),
                pl.BlockSpec((1, hidden), lambda i: (0, 0)),
            ],
            out_specs=pl.BlockSpec((block_rows, hidden), lambda i: (i, 0)),
        ),
        compiler_params=pltpu.CompilerParams(
            dimension_semantics=("parallel",),
            vmem_limit_bytes=_VMEM_LIMIT_BYTES,
        ),
    )(x2, gamma2, beta2)

    return out.reshape(orig_shape)


def _ref_layernorm(x, gamma, beta, eps):
    mean = jnp.mean(x, axis=-1, keepdims=True)
    var = jnp.mean((x - mean) ** 2, axis=-1, keepdims=True)
    return (x - mean) / jnp.sqrt(var + eps) * gamma + beta


if __name__ == "__main__":
    # Module config: LayerNorm(normalized_shape=hidden, eps=1e-5, elementwise_affine=True)
    batch, seq, hidden = 2, 8, 128  # lane-dense hidden (multiple of 128)
    eps = 1e-5

    key = jax.random.PRNGKey(0)
    kx, kg, kb = jax.random.split(key, 3)
    x = jax.random.normal(kx, (batch, seq, hidden), dtype=jnp.float32)
    gamma = 1.0 + 0.1 * jax.random.normal(kg, (hidden,), dtype=jnp.float32)
    beta = 0.1 * jax.random.normal(kb, (hidden,), dtype=jnp.float32)

    y = jax.block_until_ready(layer_norm_pallas(x, gamma, beta, eps=eps))
    y_ref = _ref_layernorm(x, gamma, beta, eps)
    assert jnp.allclose(y, y_ref, atol=1e-5, rtol=1e-5), "mismatch vs reference"

    # Ragged-grid path: rows (3*37=111) not a multiple of block_rows=16; the
    # last block is masked in-grid, no host-side padding or output slicing.
    x2 = jax.random.normal(jax.random.PRNGKey(1), (3, 37, hidden), dtype=jnp.float32)
    y2 = jax.block_until_ready(layer_norm_pallas(x2, gamma, beta, eps=eps, block_rows=16))
    y2_ref = _ref_layernorm(x2, gamma, beta, eps)
    assert jnp.allclose(y2, y2_ref, atol=1e-5, rtol=1e-5), "ragged-grid mismatch vs reference"

    print("KERNEL_OK")
</pallas_src>

<mosaic_0001>
module attributes {stable_mosaic.version = 11 : i64} {
  func.func @_layernorm_kernel(%arg0: i32, %arg1: memref<16x128xf32, #tpu.memory_space<vmem>>, %arg2: memref<1x128xf32, #tpu.memory_space<vmem>>, %arg3: memref<1x128xf32, #tpu.memory_space<vmem>>, %arg4: memref<16x128xf32, #tpu.memory_space<vmem>>) attributes {dimension_semantics = [#tpu.dimension_semantics<parallel>], iteration_bounds = array<i64: 1>, scalar_prefetch = 0 : i64, scratch_operands = 0 : i64, tpu.core_type = #tpu.core_type<tc>, window_params = [{transform_indices = @transform_0, window_bounds = array<i64: 16, 128>}, {pipeline_mode = #tpu.pipeline_mode<synchronous>, transform_indices = @transform_1, window_bounds = array<i64: 1, 128>}, {pipeline_mode = #tpu.pipeline_mode<synchronous>, transform_indices = @transform_2, window_bounds = array<i64: 1, 128>}, {transform_indices = @transform_3, window_bounds = array<i64: 16, 128>}]} {
    %c0 = arith.constant 0 : index
    %c0_0 = arith.constant 0 : index
    %0 = vector.load %arg2[%c0, %c0_0] : memref<1x128xf32, #tpu.memory_space<vmem>>, vector<1x128xf32>
    %c0_1 = arith.constant 0 : index
    %c0_2 = arith.constant 0 : index
    %1 = vector.load %arg3[%c0_1, %c0_2] : memref<1x128xf32, #tpu.memory_space<vmem>>, vector<1x128xf32>
    %c0_3 = arith.constant 0 : index
    %c0_4 = arith.constant 0 : index
    %2 = vector.load %arg1[%c0_3, %c0_4] : memref<16x128xf32, #tpu.memory_space<vmem>>, vector<16x128xf32>
    %cst = arith.constant dense<0.000000e+00> : vector<16xf32>
    %3 = vector.multi_reduction <add>, %2, %cst [1] : vector<16x128xf32> to vector<16xf32>
    %4 = vector.shape_cast %3 : vector<16xf32> to vector<16x1xf32>
    %cst_5 = arith.constant 7.812500e-03 : f32
    %5 = vector.broadcast %cst_5 : f32 to vector<16x1xf32>
    %6 = arith.mulf %4, %5 : vector<16x1xf32>
    %7 = arith.mulf %2, %2 : vector<16x128xf32>
    %cst_6 = arith.constant dense<0.000000e+00> : vector<16xf32>
    %8 = vector.multi_reduction <add>, %7, %cst_6 [1] : vector<16x128xf32> to vector<16xf32>
    %9 = vector.shape_cast %8 : vector<16xf32> to vector<16x1xf32>
    %cst_7 = arith.constant 7.812500e-03 : f32
    %10 = vector.broadcast %cst_7 : f32 to vector<16x1xf32>
    %11 = arith.mulf %9, %10 : vector<16x1xf32>
    %12 = arith.mulf %6, %6 : vector<16x1xf32>
    %13 = arith.subf %11, %12 : vector<16x1xf32>
    %cst_8 = arith.constant 0.000000e+00 : f32
    %14 = vector.broadcast %cst_8 : f32 to vector<16x1xf32>
    %15 = arith.maximumf %13, %14 : vector<16x1xf32>
    %cst_9 = arith.constant 9.99999974E-6 : f32
    %16 = vector.broadcast %cst_9 : f32 to vector<16x1xf32>
    %17 = arith.addf %15, %16 : vector<16x1xf32>
    %18 = math.rsqrt %17 : vector<16x1xf32>
    %19 = vector.broadcast %6 : vector<16x1xf32> to vector<16x128xf32>
    %20 = arith.subf %2, %19 : vector<16x128xf32>
    %21 = vector.broadcast %18 : vector<16x1xf32> to vector<16x128xf32>
    %22 = arith.mulf %20, %21 : vector<16x128xf32>
    %23 = vector.broadcast %0 : vector<1x128xf32> to vector<16x128xf32>
    %24 = arith.mulf %22, %23 : vector<16x128xf32>
    %25 = vector.broadcast %1 : vector<1x128xf32> to vector<16x128xf32>
    %26 = arith.addf %24, %25 : vector<16x128xf32>
    %c0_10 = arith.constant 0 : index
    %c0_11 = arith.constant 0 : index
    %27 = vector.load %arg4[%c0_10, %c0_11] : memref<16x128xf32, #tpu.memory_space<vmem>>, vector<16x128xf32>
    tpu.vector_store %arg4[%c0_10, %c0_11], %26 {strides = array<i32>} : memref<16x128xf32, #tpu.memory_space<vmem>>, vector<16x128xf32>,
    return
  }
  func.func @transform_0(%arg0: i32) -> (i32, i32) {
    %c0_i32 = arith.constant 0 : i32
    %c0_i32_0 = arith.constant 0 : i32
    return %arg0, %c0_i32 : i32, i32
  }
  func.func @transform_1(%arg0: i32) -> (i32, i32) {
    %c0_i32 = arith.constant 0 : i32
    %c0_i32_0 = arith.constant 0 : i32
    %c0_i32_1 = arith.constant 0 : i32
    return %c0_i32, %c0_i32_0 : i32, i32
  }
  func.func @transform_2(%arg0: i32) -> (i32, i32) {
    %c0_i32 = arith.constant 0 : i32
    %c0_i32_0 = arith.constant 0 : i32
    %c0_i32_1 = arith.constant 0 : i32
    return %c0_i32, %c0_i32_0 : i32, i32
  }
  func.func @transform_3(%arg0: i32) -> (i32, i32) {
    %c0_i32 = arith.constant 0 : i32
    %c0_i32_0 = arith.constant 0 : i32
    return %arg0, %c0_i32 : i32, i32
  }
}

</mosaic_0001>

<llo_original>
// kernel: tpu_custom_call.1
$region0: #{tpu_custom_call.1}
  #allocation0 [shape = 'u32[]', space=smem, size = 0x4, offset = 0x4, fixed_abs, tag = 'smem constant byte address 0x4 - core index']
  #allocation1 [shape = 'u32[72,128]{1,0:T(1,128)}', space=vmem, size = 0x9000, scoped, tag = 'internal scratch']
  %s0 = inlined_call_operand.hbm [shape: f32[16,128], index: 0, kind: input, shape index: {}]
  %s1 = inlined_call_operand.hbm [shape: f32[1,128], index: 1, kind: input, shape index: {}]
  %s2 = inlined_call_operand.vmem [shape: f32[1,128], index: 2, kind: input, shape index: {}]
  %s3 = inlined_call_operand.hbm [shape: f32[16,128], index: 3, kind: output, shape index: {}]
  %s4 = sld [smem:[#allocation0]]
  $region30: #{tpu_custom_call.1} parent=0
    _
  %s6 = ssub.s32 1, %s4
  %s7 = scalar_select 0, %s6, %s4
  $region1: #{tpu_custom_call.1} parent=0
    #allocation2 [shape = 'u8[8192]{0}', space=vmem, size = 0x2000, scoped, tag = 'input window, operand 0, single buffered']
    #allocation3 [shape = 's32[1]{0}', space=sflag, size = 0x4, scoped, tag = 'scoped memory for tpu_custom_call.1']
    #allocation4 [shape = 's32[1]{0}', space=sflag, size = 0x4, scoped, tag = 'scoped memory for tpu_custom_call.1']
    #allocation5 [shape = 'u8[512]{0}', space=vmem, size = 0x400, scoped, tag = 'input window, operand 1, single buffered']
    #allocation6 [shape = 's32[1]{0}', space=sflag, size = 0x4, scoped, tag = 'scoped memory for tpu_custom_call.1']
    #allocation7 [shape = 'u8[8192]{0}', space=vmem, size = 0x2000, scoped, tag = 'output window, operand 0, single buffered']
    %8 = vsyncpa [#allocation3], 0
    %9 = vsyncpa [#allocation6], 0
    %10 = vsyncpa [#allocation4], 0
    // Predicated region
    $region2: #{tpu_custom_call.1} parent=1 // pred_check
      _
    $region3: #{tpu_custom_call.1} parent=1 // pred_check_branch
      %12 = sbr.rel (0) target = $region5
    $region4: #{tpu_custom_call.1} parent=1 // pred_region
      %14 = vsyncadd [#allocation3], 0
      %s15 = sshll.u32 %s0, 4
      %s16 = int_to_ptr.hbm [resolvable:$true] %s15
      %s17 = sshll.u32 [#allocation2], 4
      %s18 = int_to_ptr.vmem [resolvable:$true] %s17
      %23 = dma.hbm_to_vmem [thread:$0]  %s16, 256, %s18, [#allocation3], 128, 128, 8
    $region5: #{tpu_custom_call.1} parent=1 // pred_fallthru
      _
    // Predicated region
    $region6: #{tpu_custom_call.1} parent=1 // pred_check
      _
    $region7: #{tpu_custom_call.1} parent=1 // pred_check_branch
      %25 = sbr.rel (0) target = $region9
    $region8: #{tpu_custom_call.1} parent=1 // pred_region
      %27 = vsyncadd [#allocation6], 0
      %s29 = sshll.u32 %s1, 4
      %s30 = int_to_ptr.hbm [resolvable:$true] %s29
      %s31 = sshll.u32 [#allocation5], 4
      %s32 = int_to_ptr.vmem [resolvable:$true] %s31
      %34 = dma.hbm_to_vmem [thread:$0]  %s30, 16, %s32, [#allocation6]
    $region9: #{tpu_custom_call.1} parent=1 // pred_fallthru
      _
    // Predicated region
    $region10: #{tpu_custom_call.1} parent=1 // pred_check
      _
    $region11: #{tpu_custom_call.1} parent=1 // pred_check_branch
      %36 = sbr.rel (0) target = $region13
    $region12: #{tpu_custom_call.1} parent=1 // pred_region
      _
    $region13: #{tpu_custom_call.1} parent=1 // pred_fallthru
      _
    // Predicated region
    $region14: #{tpu_custom_call.1} parent=1 // pred_check
      _
    $region15: #{tpu_custom_call.1} parent=1 // pred_check_branch
      %38 = sbr.rel (0) target = $region17
    $region16: #{tpu_custom_call.1} parent=1 // pred_region
      %40 = dma.done [#allocation3], 256
    $region17: #{tpu_custom_call.1} parent=1 // pred_fallthru
      _
    // Predicated region
    $region18: #{tpu_custom_call.1} parent=1 // pred_check
      _
    $region19: #{tpu_custom_call.1} parent=1 // pred_check_branch
      %42 = sbr.rel (0) target = $region21
    $region20: #{tpu_custom_call.1} parent=1 // pred_region
      %44 = dma.done [#allocation6], 16
    $region21: #{tpu_custom_call.1} parent=1 // pred_fallthru
      _
    %v45 = vld [vmem:[#allocation5] sm:$0x1]
    %v46 = vld [vmem:[%s2] sm:$0x1]
    %v47 = vld [vmem:[#allocation2] sm:$0xff]
    %v48 = vld [vmem:[#allocation2 + $0x8] sm:$0xff]
    %49 = vadd.xlane.f32.xlu0 %v47
    %v50 = vpop.xlane.xlu0 %49
    %51 = vadd.xlane.f32.xlu0 %v48
    %v52 = vpop.xlane.xlu0 %51
    %v53 = vmul.f32 %v50, 0.0078125
    %v54 = vmul.f32 %v52, 0.0078125
    %v55 = vmul.f32 %v47, %v47
    %v56 = vmul.f32 %v48, %v48
    %57 = vadd.xlane.f32.xlu0 %v55
    %v58 = vpop.xlane.xlu0 %57
    %59 = vadd.xlane.f32.xlu0 %v56
    %v60 = vpop.xlane.xlu0 %59
    %v61 = vmul.f32 %v58, 0.0078125
    %v62 = vmul.f32 %v60, 0.0078125
    %v63 = vmul.f32 %v53, %v53
    %v64 = vmul.f32 %v54, %v54
    %v65 = vsub.f32 %v61, %v63
    %v66 = vsub.f32 %v62, %v64
    %v67 = vmax.f32 %v65, 0.0
    %v68 = vmax.f32 %v66, 0.0
    %v69 = vadd.f32 %v67, 1e-05
    %v70 = vadd.f32 %v68, 1e-05
    %v71 = vrsqrt.pop %v69
    %v72 = vmul.f32 %v71, %v69
    %v73 = vmul.f32 %v72, %v71
    %v74 = vmul.f32 0.5, %v73
    %v75 = vsub.f32 1.5, %v74
    %v76 = vmul.f32 %v71, %v75
    %vm77 = vweird.f32 %v69
    %vm78 = vweird.f32 %v71
    %vm79 = vmor %vm77, %vm78
    %v80 = vsel %vm79, %v71, %v76
    %v81 = vrsqrt.pop %v70
    %v82 = vmul.f32 %v81, %v70
    %v83 = vmul.f32 %v82, %v81
    %v84 = vmul.f32 0.5, %v83
    %v85 = vsub.f32 1.5, %v84
    %v86 = vmul.f32 %v81, %v85
    %vm87 = vweird.f32 %v70
    %vm88 = vweird.f32 %v81
    %vm89 = vmor %vm87, %vm88
    %v90 = vsel %vm89, %v81, %v86
    %v91 = vsub.f32 %v47, %v53
    %v92 = vsub.f32 %v48, %v54
    %v93 = vmul.f32 %v91, %v80
    %v94 = vmul.f32 %v92, %v90
    %v96 = vperm.slane %v45, 0
    %v98 = vmul.f32 %v93, %v96
    %v99 = vmul.f32 %v94, %v96
    %v101 = vperm.slane %v46, 0
    %v103 = vadd.f32 %v98, %v101
    %v104 = vadd.f32 %v99, %v101
    %105 = vst [vmem:[#allocation7] sm:$0xff] %v103
    %106 = vst [vmem:[#allocation7 + $0x8] sm:$0xff] %v104
    // Predicated region
    $region22: #{tpu_custom_call.1} parent=1 // pred_check
      _
    $region23: #{tpu_custom_call.1} parent=1 // pred_check_branch
      %108 = sbr.rel (0) target = $region25
    $region24: #{tpu_custom_call.1} parent=1 // pred_region
      %110 = vsyncadd [#allocation4], 0
      %s111 = sshll.u32 [#allocation7], 4
      %s112 = int_to_ptr.vmem [resolvable:$true] %s111
      %s113 = sshll.u32 %s3, 4
      %s114 = int_to_ptr.hbm [resolvable:$true] %s113
      %119 = dma.vmem_to_hbm [thread:$0]  %s112, 256, %s114, [#allocation4], 128, 128, 8
    $region25: #{tpu_custom_call.1} parent=1 // pred_fallthru
      _
    // Predicated region
    $region26: #{tpu_custom_call.1} parent=1 // pred_check
      _
    $region27: #{tpu_custom_call.1} parent=1 // pred_check_branch
      %121 = sbr.rel (0) target = $region29
    $region28: #{tpu_custom_call.1} parent=1 // pred_region
      %123 = dma.done [#allocation4], 256
    $region29: #{tpu_custom_call.1} parent=1 // pred_fallthru
      _
    %124 = vsyncpa [#allocation3], 1
    %125 = vsyncpa [#allocation6], 1
    %126 = vsyncpa [#allocation4], 1

</llo_original>
